<compile_context>
chip_gen: v7x
topology: tpu7x:2x2x1
jax: 0.10.0
libtpu: 0.0.40
codegen_flags: <defaults>
</compile_context>

<pallas_src>
import functools

import jax
import jax.numpy as jnp
from jax.experimental import pallas as pl
from jax.experimental.pallas import tpu as pltpu  # noqa: F401  (TPU backend)


def _round_up(n, m):
    return ((n + m - 1) // m) * m


# ---------------------------------------------------------------------------
# Single fused Pallas kernel: whole network in one invocation.
# ---------------------------------------------------------------------------
def _fused_resnet1d_kernel(*refs, n_blocks):
    """refs = (x, w_stem, b_stem, [w1,b1,w2,b2,wp,bp]*n_blocks, w_head, b_head, o)."""
    o_ref = refs[-1]
    it = iter(refs[:-1])
    h = next(it)[...]                       # (B, Din) input activation

    def layer(h, *, relu=True, residual=None):
        w = next(it)[...]                   # (Din, Dout)  (BN already folded in)
        b = next(it)[...]                   # (1, Dout)
        y = jnp.dot(h, w, preferred_element_type=jnp.float32) + b
        if residual is not None:
            y = y + residual
        return jnp.maximum(y, 0.0) if relu else y

    h = layer(h)                            # stem: Linear+BN+ReLU (+Dropout=id)
    for _ in range(n_blocks):
        t = layer(h)                        # block: lin1+bn1+relu
        h = layer(t, residual=h)            # block: lin2+bn2 (+x) + relu
        h = layer(h)                        # projection: Linear+BN+ReLU (+Dropout=id)
    y = layer(h, relu=False)                # all heads, lane-padded to 128
    o_ref[...] = y.astype(o_ref.dtype)


@functools.partial(jax.jit, static_argnums=(2,))
def resnet1d_forward(fused_layers, x, n_classes):
    """fused_layers: list of (W', b') with BN folded; last entry is the padded head."""
    n_blocks = (len(fused_layers) - 2) // 3
    npad = fused_layers[-1][0].shape[1]
    B = x.shape[0]

    args = [x]
    for w, b in fused_layers:
        args.extend((w, b))

    out = pl.pallas_call(
        functools.partial(_fused_resnet1d_kernel, n_blocks=n_blocks),
        out_shape=jax.ShapeDtypeStruct((B, npad), x.dtype),
    )(*args)

    # Slice the lane-dense head slab back into per-head logits (plain JAX).
    outs, off = [], 0
    for nc in n_classes:
        outs.append(out[:, off:off + nc])
        off += nc
    return outs


# ---------------------------------------------------------------------------
# Deterministic parameter construction (mirrors the nn.Module __init__ shapes)
# ---------------------------------------------------------------------------
def init_linear(key, fan_in, fan_out):
    k1, k2 = jax.random.split(key)
    bound = 1.0 / float(fan_in) ** 0.5
    w = jax.random.uniform(k1, (fan_in, fan_out), jnp.float32, -bound, bound)
    b = jax.random.uniform(k2, (fan_out,), jnp.float32, -bound, bound)
    return w, b


def init_bn(key, n, eps=1e-5):
    # BatchNorm1d eval mode: y = gamma * (x - mean) / sqrt(var + eps) + beta
    # expressed as a per-feature affine (scale, shift).
    k1, k2, k3, k4 = jax.random.split(key, 4)
    gamma = 1.0 + 0.1 * jax.random.normal(k1, (n,), jnp.float32)
    beta = 0.1 * jax.random.normal(k2, (n,), jnp.float32)
    mean = 0.1 * jax.random.normal(k3, (n,), jnp.float32)
    var = jnp.abs(jax.random.normal(k4, (n,), jnp.float32)) + 0.5
    scale = gamma / jnp.sqrt(var + eps)
    shift = beta - mean * scale
    return scale, shift


def build_params(key, input_size, hidden_size_list, n_classes):
    keys = iter(jax.random.split(key, 128))
    params = {
        "stem_lin": init_linear(next(keys), input_size, hidden_size_list[0]),
        "stem_bn": init_bn(next(keys), hidden_size_list[0]),
        "blocks": [],
        "heads": [],
    }
    for i in range(1, len(hidden_size_list)):
        s = hidden_size_list[i - 1]
        params["blocks"].append(
            dict(
                lin1=init_linear(next(keys), s, s),
                bn1=init_bn(next(keys), s),
                lin2=init_linear(next(keys), s, s),
                bn2=init_bn(next(keys), s),
                proj=init_linear(next(keys), s, hidden_size_list[i]),
                proj_bn=init_bn(next(keys), hidden_size_list[i]),
            )
        )
    for out in n_classes:
        params["heads"].append(init_linear(next(keys), hidden_size_list[-1], out))
    return params


def fuse_and_pad_params(params, lane=128):
    """Fold BN into the Linear weights and build the flat (W', b') list for the kernel."""
    def fold(lin, bn):
        (w, b), (scale, shift) = lin, bn
        return w * scale[None, :], (b * scale + shift).reshape(1, -1)

    layers = [fold(params["stem_lin"], params["stem_bn"])]
    for blk in params["blocks"]:
        layers.append(fold(blk["lin1"], blk["bn1"]))
        layers.append(fold(blk["lin2"], blk["bn2"]))
        layers.append(fold(blk["proj"], blk["proj_bn"]))

    # Heads: one concatenated, lane-dense matmul (output padded to multiple of 128).
    wh = jnp.concatenate([w for w, _ in params["heads"]], axis=1)
    bh = jnp.concatenate([b for _, b in params["heads"]], axis=0)
    total = wh.shape[1]
    npad = _round_up(total, lane)
    wh = jnp.pad(wh, ((0, 0), (0, npad - total)))
    bh = jnp.pad(bh, (0, npad - total)).reshape(1, -1)
    layers.append((wh, bh))
    return layers


# ---------------------------------------------------------------------------
# Pure-JAX reference (unfolded Linear + BN affine) for correctness checking.
# ---------------------------------------------------------------------------
def reference_forward(params, x):
    def lin(z, wb):
        return z @ wb[0] + wb[1]

    def bn(z, ss):
        return z * ss[0] + ss[1]

    h = jax.nn.relu(bn(lin(x, params["stem_lin"]), params["stem_bn"]))
    for blk in params["blocks"]:
        t = jax.nn.relu(bn(lin(h, blk["lin1"]), blk["bn1"]))
        t = bn(lin(t, blk["lin2"]), blk["bn2"])
        h = jax.nn.relu(t + h)
        h = jax.nn.relu(bn(lin(h, blk["proj"]), blk["proj_bn"]))
    return [lin(h, hd) for hd in params["heads"]]


if __name__ == "__main__":
    # Small, module-consistent shapes: x is (batch, input_size) for nn.Linear.
    batch = 8
    input_size = 16
    hidden_size_list = [32, 32]
    n_classes = (3, 2)

    key = jax.random.PRNGKey(0)
    kp, kx = jax.random.split(key)
    params = build_params(kp, input_size, hidden_size_list, n_classes)
    x = jax.random.normal(kx, (batch, input_size), jnp.float32)

    fused_layers = fuse_and_pad_params(params)          # one-time host-side fold
    outs = resnet1d_forward(fused_layers, x, n_classes)  # single pallas_call
    outs = [jax.block_until_ready(o) for o in outs]

    refs = reference_forward(params, x)
    for o, r, nc in zip(outs, refs, n_classes):
        assert o.shape == (batch, nc), (o.shape, (batch, nc))
        assert jnp.allclose(o, r, rtol=1e-3, atol=1e-3), "mismatch vs reference"

    print("KERNEL_OK")
</pallas_src>

<mosaic_0001>
module attributes {stable_mosaic.version = 11 : i64} {
  func.func @_fused_resnet1d_kernel(%arg0: memref<8x16xf32, #tpu.memory_space<vmem>>, %arg1: memref<16x32xf32, #tpu.memory_space<vmem>>, %arg2: memref<1x32xf32, #tpu.memory_space<vmem>>, %arg3: memref<32x32xf32, #tpu.memory_space<vmem>>, %arg4: memref<1x32xf32, #tpu.memory_space<vmem>>, %arg5: memref<32x32xf32, #tpu.memory_space<vmem>>, %arg6: memref<1x32xf32, #tpu.memory_space<vmem>>, %arg7: memref<32x32xf32, #tpu.memory_space<vmem>>, %arg8: memref<1x32xf32, #tpu.memory_space<vmem>>, %arg9: memref<32x128xf32, #tpu.memory_space<vmem>>, %arg10: memref<1x128xf32, #tpu.memory_space<vmem>>, %arg11: memref<8x128xf32, #tpu.memory_space<vmem>>) attributes {dimension_semantics = [], scalar_prefetch = 0 : i64, scratch_operands = 0 : i64, tpu.core_type = #tpu.core_type<tc>} {
    %c0 = arith.constant 0 : index
    %c0_0 = arith.constant 0 : index
    %0 = vector.load %arg0[%c0, %c0_0] : memref<8x16xf32, #tpu.memory_space<vmem>>, vector<8x16xf32>
    %c0_1 = arith.constant 0 : index
    %c0_2 = arith.constant 0 : index
    %1 = vector.load %arg1[%c0_1, %c0_2] : memref<16x32xf32, #tpu.memory_space<vmem>>, vector<16x32xf32>
    %c0_3 = arith.constant 0 : index
    %c0_4 = arith.constant 0 : index
    %2 = vector.load %arg2[%c0_3, %c0_4] : memref<1x32xf32, #tpu.memory_space<vmem>>, vector<1x32xf32>
    %cst = arith.constant dense<0.000000e+00> : vector<8x32xf32>
    %3 = tpu.matmul %0, %1, %cst {dimension_numbers = #tpu.dot_dimension_numbers<[1], [0], [0], [1], [0, 0, 1, 1], [], []>} : vector<8x16xf32>, vector<16x32xf32>, vector<8x32xf32> -> vector<8x32xf32>
    %4 = vector.broadcast %2 : vector<1x32xf32> to vector<8x32xf32>
    %5 = arith.addf %3, %4 : vector<8x32xf32>
    %cst_5 = arith.constant 0.000000e+00 : f32
    %6 = vector.broadcast %cst_5 : f32 to vector<8x32xf32>
    %7 = arith.maximumf %5, %6 : vector<8x32xf32>
    %c0_6 = arith.constant 0 : index
    %c0_7 = arith.constant 0 : index
    %8 = vector.load %arg3[%c0_6, %c0_7] : memref<32x32xf32, #tpu.memory_space<vmem>>, vector<32x32xf32>
    %c0_8 = arith.constant 0 : index
    %c0_9 = arith.constant 0 : index
    %9 = vector.load %arg4[%c0_8, %c0_9] : memref<1x32xf32, #tpu.memory_space<vmem>>, vector<1x32xf32>
    %cst_10 = arith.constant dense<0.000000e+00> : vector<8x32xf32>
    %10 = tpu.matmul %7, %8, %cst_10 {dimension_numbers = #tpu.dot_dimension_numbers<[1], [0], [0], [1], [0, 0, 1, 1], [], []>} : vector<8x32xf32>, vector<32x32xf32>, vector<8x32xf32> -> vector<8x32xf32>
    %11 = vector.broadcast %9 : vector<1x32xf32> to vector<8x32xf32>
    %12 = arith.addf %10, %11 : vector<8x32xf32>
    %cst_11 = arith.constant 0.000000e+00 : f32
    %13 = vector.broadcast %cst_11 : f32 to vector<8x32xf32>
    %14 = arith.maximumf %12, %13 : vector<8x32xf32>
    %c0_12 = arith.constant 0 : index
    %c0_13 = arith.constant 0 : index
    %15 = vector.load %arg5[%c0_12, %c0_13] : memref<32x32xf32, #tpu.memory_space<vmem>>, vector<32x32xf32>
    %c0_14 = arith.constant 0 : index
    %c0_15 = arith.constant 0 : index
    %16 = vector.load %arg6[%c0_14, %c0_15] : memref<1x32xf32, #tpu.memory_space<vmem>>, vector<1x32xf32>
    %cst_16 = arith.constant dense<0.000000e+00> : vector<8x32xf32>
    %17 = tpu.matmul %14, %15, %cst_16 {dimension_numbers = #tpu.dot_dimension_numbers<[1], [0], [0], [1], [0, 0, 1, 1], [], []>} : vector<8x32xf32>, vector<32x32xf32>, vector<8x32xf32> -> vector<8x32xf32>
    %18 = vector.broadcast %16 : vector<1x32xf32> to vector<8x32xf32>
    %19 = arith.addf %17, %18 : vector<8x32xf32>
    %20 = arith.addf %19, %7 : vector<8x32xf32>
    %cst_17 = arith.constant 0.000000e+00 : f32
    %21 = vector.broadcast %cst_17 : f32 to vector<8x32xf32>
    %22 = arith.maximumf %20, %21 : vector<8x32xf32>
    %c0_18 = arith.constant 0 : index
    %c0_19 = arith.constant 0 : index
    %23 = vector.load %arg7[%c0_18, %c0_19] : memref<32x32xf32, #tpu.memory_space<vmem>>, vector<32x32xf32>
    %c0_20 = arith.constant 0 : index
    %c0_21 = arith.constant 0 : index
    %24 = vector.load %arg8[%c0_20, %c0_21] : memref<1x32xf32, #tpu.memory_space<vmem>>, vector<1x32xf32>
    %cst_22 = arith.constant dense<0.000000e+00> : vector<8x32xf32>
    %25 = tpu.matmul %22, %23, %cst_22 {dimension_numbers = #tpu.dot_dimension_numbers<[1], [0], [0], [1], [0, 0, 1, 1], [], []>} : vector<8x32xf32>, vector<32x32xf32>, vector<8x32xf32> -> vector<8x32xf32>
    %26 = vector.broadcast %24 : vector<1x32xf32> to vector<8x32xf32>
    %27 = arith.addf %25, %26 : vector<8x32xf32>
    %cst_23 = arith.constant 0.000000e+00 : f32
    %28 = vector.broadcast %cst_23 : f32 to vector<8x32xf32>
    %29 = arith.maximumf %27, %28 : vector<8x32xf32>
    %c0_24 = arith.constant 0 : index
    %c0_25 = arith.constant 0 : index
    %30 = vector.load %arg9[%c0_24, %c0_25] : memref<32x128xf32, #tpu.memory_space<vmem>>, vector<32x128xf32>
    %c0_26 = arith.constant 0 : index
    %c0_27 = arith.constant 0 : index
    %31 = vector.load %arg10[%c0_26, %c0_27] : memref<1x128xf32, #tpu.memory_space<vmem>>, vector<1x128xf32>
    %cst_28 = arith.constant dense<0.000000e+00> : vector<8x128xf32>
    %32 = tpu.matmul %29, %30, %cst_28 {dimension_numbers = #tpu.dot_dimension_numbers<[1], [0], [0], [1], [0, 0, 1, 1], [], []>} : vector<8x32xf32>, vector<32x128xf32>, vector<8x128xf32> -> vector<8x128xf32>
    %33 = vector.broadcast %31 : vector<1x128xf32> to vector<8x128xf32>
    %34 = arith.addf %32, %33 : vector<8x128xf32>
    %c0_29 = arith.constant 0 : index
    %c0_30 = arith.constant 0 : index
    %35 = vector.load %arg11[%c0_29, %c0_30] : memref<8x128xf32, #tpu.memory_space<vmem>>, vector<8x128xf32>
    tpu.vector_store %arg11[%c0_29, %c0_30], %34 {strides = array<i32>} : memref<8x128xf32, #tpu.memory_space<vmem>>, vector<8x128xf32>,
    return
  }
}

</mosaic_0001>

<llo_original>
// kernel: resnet1d_forward.1
$region0: #{resnet1d_forward.1}
  #allocation0 [shape = 'u32[]', space=smem, size = 0x4, offset = 0x4, fixed_abs, tag = 'smem constant byte address 0x4 - core index']
  #allocation1 [shape = 'u32[144,128]{1,0:T(1,128)}', space=vmem, size = 0x12000, scoped, tag = 'internal scratch']
  %s0 = inlined_call_operand.hbm [shape: f32[8,16], index: 0, kind: input, shape index: {}]
  %s1 = inlined_call_operand.vmem [shape: f32[16,32], index: 1, kind: input, shape index: {}]
  %s2 = inlined_call_operand.vmem [shape: f32[1,32], index: 2, kind: input, shape index: {}]
  %s3 = inlined_call_operand.hbm [shape: f32[32,32], index: 3, kind: input, shape index: {}]
  %s4 = inlined_call_operand.vmem [shape: f32[1,32], index: 4, kind: input, shape index: {}]
  %s5 = inlined_call_operand.hbm [shape: f32[32,32], index: 5, kind: input, shape index: {}]
  %s6 = inlined_call_operand.vmem [shape: f32[1,32], index: 6, kind: input, shape index: {}]
  %s7 = inlined_call_operand.hbm [shape: f32[32,32], index: 7, kind: input, shape index: {}]
  %s8 = inlined_call_operand.vmem [shape: f32[1,32], index: 8, kind: input, shape index: {}]
  %s9 = inlined_call_operand.hbm [shape: f32[32,128], index: 9, kind: input, shape index: {}]
  %s10 = inlined_call_operand.hbm [shape: f32[1,128], index: 10, kind: input, shape index: {}]
  %s11 = inlined_call_operand.vmem [shape: f32[8,128], index: 11, kind: output, shape index: {}]
  %s12 = sld [smem:[#allocation0]]
  $region78: #{resnet1d_forward.1} parent=0
    _
  %s14 = ssub.s32 1, %s12
  %s15 = scalar_select 0, %s14, %s12
  $region1: #{resnet1d_forward.1} parent=0
    #allocation2 [shape = 'u8[4096]{0}', space=vmem, size = 0x1000, scoped, tag = 'input window, operand 0, single buffered']
    #allocation3 [shape = 's32[1]{0}', space=sflag, size = 0x4, scoped, tag = 'scoped memory for resnet1d_forward.1']
    #allocation4 [shape = 'u8[16384]{0}', space=vmem, size = 0x4000, scoped, tag = 'input window, operand 3, single buffered']
    #allocation5 [shape = 's32[1]{0}', space=sflag, size = 0x4, scoped, tag = 'scoped memory for resnet1d_forward.1']
    #allocation6 [shape = 'u8[16384]{0}', space=vmem, size = 0x4000, scoped, tag = 'input window, operand 5, single buffered']
    #allocation7 [shape = 'u8[16384]{0}', space=vmem, size = 0x4000, scoped, tag = 'input window, operand 7, single buffered']
    #allocation8 [shape = 's32[1]{0}', space=sflag, size = 0x4, scoped, tag = 'scoped memory for resnet1d_forward.1']
    #allocation9 [shape = 'u8[16384]{0}', space=vmem, size = 0x4000, scoped, tag = 'input window, operand 9, single buffered']
    #allocation10 [shape = 'u8[512]{0}', space=vmem, size = 0x400, scoped, tag = 'input window, operand 10, single buffered']
    #allocation11 [shape = 's32[1]{0}', space=sflag, size = 0x4, scoped, tag = 'scoped memory for resnet1d_forward.1']
    %16 = vsyncpa [#allocation3], 0
    %17 = vsyncpa [#allocation5], 0
    %18 = vsyncpa [#allocation8], 0
    %19 = vsyncpa [#allocation11], 0
    // Predicated region
    $region2: #{resnet1d_forward.1} parent=1 // pred_check
      _
    $region3: #{resnet1d_forward.1} parent=1 // pred_check_branch
      %21 = sbr.rel (0) target = $region5
    $region4: #{resnet1d_forward.1} parent=1 // pred_region
      %s23 = ssub.s32 128, 128
      %24 = vsyncadd [#allocation3], %s23
      %s26 = sshll.u32 [#allocation2], 4
      %s27 = int_to_ptr.vmem [resolvable:$true] %s26
      %29 = dma.hbm_to_vmem [thread:$0]  %s0, 128, %s27, [#allocation3]
    $region5: #{resnet1d_forward.1} parent=1 // pred_fallthru
      _
    // Predicated region
    $region6: #{resnet1d_forward.1} parent=1 // pred_check
      _
    $region7: #{resnet1d_forward.1} parent=1 // pred_check_branch
      %31 = sbr.rel (0) target = $region9
    $region8: #{resnet1d_forward.1} parent=1 // pred_region
      _
    $region9: #{resnet1d_forward.1} parent=1 // pred_fallthru
      _
    // Predicated region
    $region10: #{resnet1d_forward.1} parent=1 // pred_check
      _
    $region11: #{resnet1d_forward.1} parent=1 // pred_check_branch
      %33 = sbr.rel (0) target = $region13
    $region12: #{resnet1d_forward.1} parent=1 // pred_region
      _
    $region13: #{resnet1d_forward.1} parent=1 // pred_fallthru
      _
    // Predicated region
    $region14: #{resnet1d_forward.1} parent=1 // pred_check
      _
    $region15: #{resnet1d_forward.1} parent=1 // pred_check_branch
      %35 = sbr.rel (0) target = $region17
    $region16: #{resnet1d_forward.1} parent=1 // pred_region
      %s37 = ssub.s32 512, 512
      %38 = vsyncadd [#allocation5], %s37
      %s39 = sshll.u32 [#allocation4], 4
      %s40 = int_to_ptr.vmem [resolvable:$true] %s39
      %45 = dma.hbm_to_vmem [thread:$0]  %s3, 512, %s40, [#allocation5], 128, 128, 8
    $region17: #{resnet1d_forward.1} parent=1 // pred_fallthru
      _
    // Predicated region
    $region18: #{resnet1d_forward.1} parent=1 // pred_check
      _
    $region19: #{resnet1d_forward.1} parent=1 // pred_check_branch
      %47 = sbr.rel (0) target = $region21
    $region20: #{resnet1d_forward.1} parent=1 // pred_region
      _
    $region21: #{resnet1d_forward.1} parent=1 // pred_fallthru
      _
    // Predicated region
    $region22: #{resnet1d_forward.1} parent=1 // pred_check
      _
    $region23: #{resnet1d_forward.1} parent=1 // pred_check_branch
      %49 = sbr.rel (0) target = $region25
    $region24: #{resnet1d_forward.1} parent=1 // pred_region
      %s51 = ssub.s32 512, 512
      %52 = vsyncadd [#allocation5], %s51
      %s53 = sshll.u32 [#allocation6], 4
      %s54 = int_to_ptr.vmem [resolvable:$true] %s53
      %59 = dma.hbm_to_vmem [thread:$0]  %s5, 512, %s54, [#allocation5], 128, 128, 8
    $region25: #{resnet1d_forward.1} parent=1 // pred_fallthru
      _
    // Predicated region
    $region26: #{resnet1d_forward.1} parent=1 // pred_check
      _
    $region27: #{resnet1d_forward.1} parent=1 // pred_check_branch
      %61 = sbr.rel (0) target = $region29
    $region28: #{resnet1d_forward.1} parent=1 // pred_region
      _
    $region29: #{resnet1d_forward.1} parent=1 // pred_fallthru
      _
    // Predicated region
    $region30: #{resnet1d_forward.1} parent=1 // pred_check
      _
    $region31: #{resnet1d_forward.1} parent=1 // pred_check_branch
      %63 = sbr.rel (0) target = $region33
    $region32: #{resnet1d_forward.1} parent=1 // pred_region
      %s65 = ssub.s32 512, 512
      %66 = vsyncadd [#allocation8], %s65
      %s67 = sshll.u32 [#allocation7], 4
      %s68 = int_to_ptr.vmem [resolvable:$true] %s67
      %73 = dma.hbm_to_vmem [thread:$0]  %s7, 512, %s68, [#allocation8], 128, 128, 8
    $region33: #{resnet1d_forward.1} parent=1 // pred_fallthru
      _
    // Predicated region
    $region34: #{resnet1d_forward.1} parent=1 // pred_check
      _
    $region35: #{resnet1d_forward.1} parent=1 // pred_check_branch
      %75 = sbr.rel (0) target = $region37
    $region36: #{resnet1d_forward.1} parent=1 // pred_region
      _
    $region37: #{resnet1d_forward.1} parent=1 // pred_fallthru
      _
    // Predicated region
    $region38: #{resnet1d_forward.1} parent=1 // pred_check
      _
    $region39: #{resnet1d_forward.1} parent=1 // pred_check_branch
      %77 = sbr.rel (0) target = $region41
    $region40: #{resnet1d_forward.1} parent=1 // pred_region
      %s79 = ssub.s32 512, 512
      %80 = vsyncadd [#allocation8], %s79
      %s81 = sshll.u32 [#allocation9], 4
      %s82 = int_to_ptr.vmem [resolvable:$true] %s81
      %87 = dma.hbm_to_vmem [thread:$0]  %s9, 512, %s82, [#allocation8], 128, 128, 8
    $region41: #{resnet1d_forward.1} parent=1 // pred_fallthru
      _
    // Predicated region
    $region42: #{resnet1d_forward.1} parent=1 // pred_check
      _
    $region43: #{resnet1d_forward.1} parent=1 // pred_check_branch
      %89 = sbr.rel (0) target = $region45
    $region44: #{resnet1d_forward.1} parent=1 // pred_region
      %s91 = ssub.s32 16, 16
      %92 = vsyncadd [#allocation11], %s91
      %s94 = sshll.u32 [#allocation10], 4
      %s95 = int_to_ptr.vmem [resolvable:$true] %s94
      %97 = dma.hbm_to_vmem [thread:$0]  %s10, 16, %s95, [#allocation11]
    $region45: #{resnet1d_forward.1} parent=1 // pred_fallthru
      _
    // Predicated region
    $region46: #{resnet1d_forward.1} parent=1 // pred_check
      _
    $region47: #{resnet1d_forward.1} parent=1 // pred_check_branch
      %99 = sbr.rel (0) target = $region49
    $region48: #{resnet1d_forward.1} parent=1 // pred_region
      %100 = dma.done [#allocation3], 128
    $region49: #{resnet1d_forward.1} parent=1 // pred_fallthru
      _
    // Predicated region
    $region50: #{resnet1d_forward.1} parent=1 // pred_check
      _
    $region51: #{resnet1d_forward.1} parent=1 // pred_check_branch
      %102 = sbr.rel (0) target = $region53
    $region52: #{resnet1d_forward.1} parent=1 // pred_region
      %103 = dma.done [#allocation5], 512
    $region53: #{resnet1d_forward.1} parent=1 // pred_fallthru
      _
    // Predicated region
    $region54: #{resnet1d_forward.1} parent=1 // pred_check
      _
    $region55: #{resnet1d_forward.1} parent=1 // pred_check_branch
      %105 = sbr.rel (0) target = $region57
    $region56: #{resnet1d_forward.1} parent=1 // pred_region
      %106 = dma.done [#allocation5], 512
    $region57: #{resnet1d_forward.1} parent=1 // pred_fallthru
      _
    // Predicated region
    $region58: #{resnet1d_forward.1} parent=1 // pred_check
      _
    $region59: #{resnet1d_forward.1} parent=1 // pred_check_branch
      %108 = sbr.rel (0) target = $region61
    $region60: #{resnet1d_forward.1} parent=1 // pred_region
      %109 = dma.done [#allocation8], 512
    $region61: #{resnet1d_forward.1} parent=1 // pred_fallthru
      _
    // Predicated region
    $region62: #{resnet1d_forward.1} parent=1 // pred_check
      _
    $region63: #{resnet1d_forward.1} parent=1 // pred_check_branch
      %111 = sbr.rel (0) target = $region65
    $region64: #{resnet1d_forward.1} parent=1 // pred_region
      %112 = dma.done [#allocation8], 512
    $region65: #{resnet1d_forward.1} parent=1 // pred_fallthru
      _
    // Predicated region
    $region66: #{resnet1d_forward.1} parent=1 // pred_check
      _
    $region67: #{resnet1d_forward.1} parent=1 // pred_check_branch
      %114 = sbr.rel (0) target = $region69
    $region68: #{resnet1d_forward.1} parent=1 // pred_region
      %115 = dma.done [#allocation11], 16
    $region69: #{resnet1d_forward.1} parent=1 // pred_fallthru
      _
    %v116 = vld [vmem:[#allocation2] sm:$0xff]
    %v117 = vld [vmem:[%s1] sm:$0xff]
    %v118 = vld [vmem:[%s1 + $0x8] sm:$0xff]
    %v119 = vld [vmem:[%s2] sm:$0x1]
    %v121 = vlaneseq
    %v122 = vshrl.u32 %v121, 7
    %v123 = vsub.s32 0, %v122
    %v124 = vrot.slane %v119, %v123
    %vm126 = vcmask 130048
    %v128 = vsel %vm126, %v116, 0
    %130 = vmatprep.subr.mxu0 0.0
    %131 = vmatpush1.msra.mxu0 %v117
    %132 = vmatprep.subr.mxu0 0.0
    %133 = vmatpush1.msra.mxu0 %v118
    %134 = vmatprep.subr.mxu0 0.0
    %135 = vmatpush1.msra.mxu0 0.0
    %136 = vmatprep.subr.mxu0 0.0
    %137 = vmatpush1.msra.mxu0 0.0
    %138 = vmatprep.subr.mxu0 0.0
    %139 = vmatpush1.msra.mxu0 0.0
    %140 = vmatprep.subr.mxu0 0.0
    %141 = vmatpush1.msra.mxu0 0.0
    %142 = vmatprep.subr.mxu0 0.0
    %143 = vmatpush1.msra.mxu0 0.0
    %144 = vmatprep.subr.mxu0 0.0
    %145 = vmatpush1.msra.mxu0 0.0
    %146 = vmatprep.subr.mxu0 0.0
    %147 = vmatpush1.msra.mxu0 0.0
    %148 = vmatprep.subr.mxu0 0.0
    %149 = vmatpush1.msra.mxu0 0.0
    %150 = vmatprep.subr.mxu0 0.0
    %151 = vmatpush1.msra.mxu0 0.0
    %152 = vmatprep.subr.mxu0 0.0
    %153 = vmatpush1.msra.mxu0 0.0
    %154 = vmatprep.subr.mxu0 0.0
    %155 = vmatpush1.msra.mxu0 0.0
    %156 = vmatprep.subr.mxu0 0.0
    %157 = vmatpush1.msra.mxu0 0.0
    %158 = vmatprep.subr.mxu0 0.0
    %159 = vmatpush1.msra.mxu0 0.0
    %160 = vmatprep.subr.mxu0 0.0
    %161 = vmatpush1.msra.mxu0 0.0
    %162 = vmatprep.subr.mxu0 0.0
    %163 = vmatpush1.msra.mxu0 0.0
    %164 = vmatprep.subr.mxu0 0.0
    %165 = vmatpush1.msra.mxu0 0.0
    %166 = vmatprep.subr.mxu0 0.0
    %167 = vmatpush1.msra.mxu0 0.0
    %168 = vmatprep.subr.mxu0 0.0
    %169 = vmatpush1.msra.mxu0 0.0
    %170 = vmatprep.subr.mxu0 0.0
    %171 = vmatpush1.msra.mxu0 0.0
    %172 = vmatprep.subr.mxu0 0.0
    %173 = vmatpush1.msra.mxu0 0.0
    %174 = vmatprep.subr.mxu0 0.0
    %175 = vmatpush1.msra.mxu0 0.0
    %176 = vmatprep.subr.mxu0 0.0
    %177 = vmatpush1.msra.mxu0 0.0
    %178 = vmatprep.subr.mxu0 0.0
    %179 = vmatpush1.msra.mxu0 0.0
    %180 = vmatprep.subr.mxu0 0.0
    %181 = vmatpush1.msra.mxu0 0.0
    %182 = vmatprep.subr.mxu0 0.0
    %183 = vmatpush1.msra.mxu0 0.0
    %184 = vmatprep.subr.mxu0 0.0
    %185 = vmatpush1.msra.mxu0 0.0
    %186 = vmatprep.subr.mxu0 0.0
    %187 = vmatpush1.msra.mxu0 0.0
    %188 = vmatprep.subr.mxu0 0.0
    %189 = vmatpush1.msra.mxu0 0.0
    %190 = vmatprep.subr.mxu0 0.0
    %191 = vmatpush1.msra.mxu0 0.0
    %192 = vmatprep.subr.mxu0 0.0
    %193 = vmatpush1.msra.mxu0 0.0
    %194 = vmatprep.mubr.f32.mxu0 0.0
    %195 = vmatmul.mubr.f32.gmra.mrb[0].mxu0 %v128
    %v196 = vpop.f32.mrb[0].mxu0
    %v197 = vadd.f32 %v124, %v196
    %v198 = vpop.f32.mrb[0].mxu0
    %199 = vdwg.mxu0
    %v200 = vmax.f32 %v197, 0.0
    %v201 = vld [vmem:[#allocation4] sm:$0xff]
    %v202 = vld [vmem:[#allocation4 + $0x8] sm:$0xff]
    %v203 = vld [vmem:[#allocation4 + $0x10] sm:$0xff]
    %v204 = vld [vmem:[#allocation4 + $0x18] sm:$0xff]
    %v205 = vld [vmem:[%s4] sm:$0x1]
    %v207 = vlaneseq
    %v208 = vshrl.u32 %v207, 7
    %v209 = vsub.s32 0, %v208
    %v210 = vrot.slane %v205, %v209
    %vm212 = vcmask 261120
    %v214 = vsel %vm212, %v200, 0
    %216 = vmatprep.subr.mxu0 0.0
    %217 = vmatpush1.msra.mxu0 %v201
    %218 = vmatprep.subr.mxu0 0.0
    %219 = vmatpush1.msra.mxu0 %v202
    %220 = vmatprep.subr.mxu0 0.0
    %221 = vmatpush1.msra.mxu0 %v203
    %222 = vmatprep.subr.mxu0 0.0
    %223 = vmatpush1.msra.mxu0 %v204
    %224 = vmatprep.subr.mxu0 0.0
    %225 = vmatpush1.msra.mxu0 0.0
    %226 = vmatprep.subr.mxu0 0.0
    %227 = vmatpush1.msra.mxu0 0.0
    %228 = vmatprep.subr.mxu0 0.0
    %229 = vmatpush1.msra.mxu0 0.0
    %230 = vmatprep.subr.mxu0 0.0
    %231 = vmatpush1.msra.mxu0 0.0
    %232 = vmatprep.subr.mxu0 0.0
    %233 = vmatpush1.msra.mxu0 0.0
    %234 = vmatprep.subr.mxu0 0.0
    %235 = vmatpush1.msra.mxu0 0.0
    %236 = vmatprep.subr.mxu0 0.0
    %237 = vmatpush1.msra.mxu0 0.0
    %238 = vmatprep.subr.mxu0 0.0
    %239 = vmatpush1.msra.mxu0 0.0
    %240 = vmatprep.subr.mxu0 0.0
    %241 = vmatpush1.msra.mxu0 0.0
    %242 = vmatprep.subr.mxu0 0.0
    %243 = vmatpush1.msra.mxu0 0.0
    %244 = vmatprep.subr.mxu0 0.0
    %245 = vmatpush1.msra.mxu0 0.0
    %246 = vmatprep.subr.mxu0 0.0
    %247 = vmatpush1.msra.mxu0 0.0
    %248 = vmatprep.subr.mxu0 0.0
    %249 = vmatpush1.msra.mxu0 0.0
    %250 = vmatprep.subr.mxu0 0.0
    %251 = vmatpush1.msra.mxu0 0.0
    %252 = vmatprep.subr.mxu0 0.0
    %253 = vmatpush1.msra.mxu0 0.0
    %254 = vmatprep.subr.mxu0 0.0
    %255 = vmatpush1.msra.mxu0 0.0
    %256 = vmatprep.subr.mxu0 0.0
    %257 = vmatpush1.msra.mxu0 0.0
    %258 = vmatprep.subr.mxu0 0.0
    %259 = vmatpush1.msra.mxu0 0.0
    %260 = vmatprep.subr.mxu0 0.0
    %261 = vmatpush1.msra.mxu0 0.0
    %262 = vmatprep.subr.mxu0 0.0
    %263 = vmatpush1.msra.mxu0 0.0
    %264 = vmatprep.subr.mxu0 0.0
    %265 = vmatpush1.msra.mxu0 0.0
    %266 = vmatprep.subr.mxu0 0.0
    %267 = vmatpush1.msra.mxu0 0.0
    %268 = vmatprep.subr.mxu0 0.0
    %269 = vmatpush1.msra.mxu0 0.0
    %270 = vmatprep.subr.mxu0 0.0
    %271 = vmatpush1.msra.mxu0 0.0
    %272 = vmatprep.subr.mxu0 0.0
    %273 = vmatpush1.msra.mxu0 0.0
    %274 = vmatprep.subr.mxu0 0.0
    %275 = vmatpush1.msra.mxu0 0.0
    %276 = vmatprep.subr.mxu0 0.0
    %277 = vmatpush1.msra.mxu0 0.0
    %278 = vmatprep.subr.mxu0 0.0
    %279 = vmatpush1.msra.mxu0 0.0
    %280 = vmatprep.mubr.f32.mxu0 0.0
    %281 = vmatmul.mubr.f32.gmra.mrb[0].mxu0 %v214
    %v282 = vpop.f32.mrb[0].mxu0
    %v283 = vadd.f32 %v210, %v282
    %v284 = vpop.f32.mrb[0].mxu0
    %285 = vdwg.mxu0
    %v286 = vmax.f32 %v283, 0.0
    %v287 = vld [vmem:[#allocation6] sm:$0xff]
    %v288 = vld [vmem:[#allocation6 + $0x8] sm:$0xff]
    %v289 = vld [vmem:[#allocation6 + $0x10] sm:$0xff]
    %v290 = vld [vmem:[#allocation6 + $0x18] sm:$0xff]
    %v291 = vld [vmem:[%s6] sm:$0x1]
    %v293 = vlaneseq
    %v294 = vshrl.u32 %v293, 7
    %v295 = vsub.s32 0, %v294
    %v296 = vrot.slane %v291, %v295
    %v299 = vsel %vm212, %v286, 0
    %301 = vmatprep.subr.mxu0 0.0
    %302 = vmatpush1.msra.mxu0 %v287
    %303 = vmatprep.subr.mxu0 0.0
    %304 = vmatpush1.msra.mxu0 %v288
    %305 = vmatprep.subr.mxu0 0.0
    %306 = vmatpush1.msra.mxu0 %v289
    %307 = vmatprep.subr.mxu0 0.0
    %308 = vmatpush1.msra.mxu0 %v290
    %309 = vmatprep.subr.mxu0 0.0
    %310 = vmatpush1.msra.mxu0 0.0
    %311 = vmatprep.subr.mxu0 0.0
    %312 = vmatpush1.msra.mxu0 0.0
    %313 = vmatprep.subr.mxu0 0.0
    %314 = vmatpush1.msra.mxu0 0.0
    %315 = vmatprep.subr.mxu0 0.0
    %316 = vmatpush1.msra.mxu0 0.0
    %317 = vmatprep.subr.mxu0 0.0
    %318 = vmatpush1.msra.mxu0 0.0
    %319 = vmatprep.subr.mxu0 0.0
    %320 = vmatpush1.msra.mxu0 0.0
    %321 = vmatprep.subr.mxu0 0.0
    %322 = vmatpush1.msra.mxu0 0.0
    %323 = vmatprep.subr.mxu0 0.0
    %324 = vmatpush1.msra.mxu0 0.0
    %325 = vmatprep.subr.mxu0 0.0
    %326 = vmatpush1.msra.mxu0 0.0
    %327 = vmatprep.subr.mxu0 0.0
    %328 = vmatpush1.msra.mxu0 0.0
    %329 = vmatprep.subr.mxu0 0.0
    %330 = vmatpush1.msra.mxu0 0.0
    %331 = vmatprep.subr.mxu0 0.0
    %332 = vmatpush1.msra.mxu0 0.0
    %333 = vmatprep.subr.mxu0 0.0
    %334 = vmatpush1.msra.mxu0 0.0
    %335 = vmatprep.subr.mxu0 0.0
    %336 = vmatpush1.msra.mxu0 0.0
    %337 = vmatprep.subr.mxu0 0.0
    %338 = vmatpush1.msra.mxu0 0.0
    %339 = vmatprep.subr.mxu0 0.0
    %340 = vmatpush1.msra.mxu0 0.0
    %341 = vmatprep.subr.mxu0 0.0
    %342 = vmatpush1.msra.mxu0 0.0
    %343 = vmatprep.subr.mxu0 0.0
    %344 = vmatpush1.msra.mxu0 0.0
    %345 = vmatprep.subr.mxu0 0.0
    %346 = vmatpush1.msra.mxu0 0.0
    %347 = vmatprep.subr.mxu0 0.0
    %348 = vmatpush1.msra.mxu0 0.0
    %349 = vmatprep.subr.mxu0 0.0
    %350 = vmatpush1.msra.mxu0 0.0
    %351 = vmatprep.subr.mxu0 0.0
    %352 = vmatpush1.msra.mxu0 0.0
    %353 = vmatprep.subr.mxu0 0.0
    %354 = vmatpush1.msra.mxu0 0.0
    %355 = vmatprep.subr.mxu0 0.0
    %356 = vmatpush1.msra.mxu0 0.0
    %357 = vmatprep.subr.mxu0 0.0
    %358 = vmatpush1.msra.mxu0 0.0
    %359 = vmatprep.subr.mxu0 0.0
    %360 = vmatpush1.msra.mxu0 0.0
    %361 = vmatprep.subr.mxu0 0.0
    %362 = vmatpush1.msra.mxu0 0.0
    %363 = vmatprep.subr.mxu0 0.0
    %364 = vmatpush1.msra.mxu0 0.0
    %365 = vmatprep.mubr.f32.mxu0 0.0
    %366 = vmatmul.mubr.f32.gmra.mrb[0].mxu0 %v299
    %v367 = vpop.f32.mrb[0].mxu0
    %v368 = vadd.f32 %v296, %v367
    %v369 = vpop.f32.mrb[0].mxu0
    %370 = vdwg.mxu0
    %v371 = vadd.f32 %v368, %v200
    %v372 = vmax.f32 %v371, 0.0
    %v373 = vld [vmem:[#allocation7] sm:$0xff]
    %v374 = vld [vmem:[#allocation7 + $0x8] sm:$0xff]
    %v375 = vld [vmem:[#allocation7 + $0x10] sm:$0xff]
    %v376 = vld [vmem:[#allocation7 + $0x18] sm:$0xff]
    %v377 = vld [vmem:[%s8] sm:$0x1]
    %v379 = vlaneseq
    %v380 = vshrl.u32 %v379, 7
    %v381 = vsub.s32 0, %v380
    %v382 = vrot.slane %v377, %v381
    %v385 = vsel %vm212, %v372, 0
    %387 = vmatprep.subr.mxu0 0.0
    %388 = vmatpush1.msra.mxu0 %v373
    %389 = vmatprep.subr.mxu0 0.0
    %390 = vmatpush1.msra.mxu0 %v374
    %391 = vmatprep.subr.mxu0 0.0
    %392 = vmatpush1.msra.mxu0 %v375
    %393 = vmatprep.subr.mxu0 0.0
    %394 = vmatpush1.msra.mxu0 %v376
    %395 = vmatprep.subr.mxu0 0.0
    %396 = vmatpush1.msra.mxu0 0.0
    %397 = vmatprep.subr.mxu0 0.0
    %398 = vmatpush1.msra.mxu0 0.0
    %399 = vmatprep.subr.mxu0 0.0
    %400 = vmatpush1.msra.mxu0 0.0
    %401 = vmatprep.subr.mxu0 0.0
    %402 = vmatpush1.msra.mxu0 0.0
    %403 = vmatprep.subr.mxu0 0.0
    %404 = vmatpush1.msra.mxu0 0.0
    %405 = vmatprep.subr.mxu0 0.0
    %406 = vmatpush1.msra.mxu0 0.0
    %407 = vmatprep.subr.mxu0 0.0
    %408 = vmatpush1.msra.mxu0 0.0
    %409 = vmatprep.subr.mxu0 0.0
    %410 = vmatpush1.msra.mxu0 0.0
    %411 = vmatprep.subr.mxu0 0.0
    %412 = vmatpush1.msra.mxu0 0.0
    %413 = vmatprep.subr.mxu0 0.0
    %414 = vmatpush1.msra.mxu0 0.0
    %415 = vmatprep.subr.mxu0 0.0
    %416 = vmatpush1.msra.mxu0 0.0
    %417 = vmatprep.subr.mxu0 0.0
    %418 = vmatpush1.msra.mxu0 0.0
    %419 = vmatprep.subr.mxu0 0.0
    %420 = vmatpush1.msra.mxu0 0.0
    %421 = vmatprep.subr.mxu0 0.0
    %422 = vmatpush1.msra.mxu0 0.0
    %423 = vmatprep.subr.mxu0 0.0
    %424 = vmatpush1.msra.mxu0 0.0
    %425 = vmatprep.subr.mxu0 0.0
    %426 = vmatpush1.msra.mxu0 0.0
    %427 = vmatprep.subr.mxu0 0.0
    %428 = vmatpush1.msra.mxu0 0.0
    %429 = vmatprep.subr.mxu0 0.0
    %430 = vmatpush1.msra.mxu0 0.0
    %431 = vmatprep.subr.mxu0 0.0
    %432 = vmatpush1.msra.mxu0 0.0
    %433 = vmatprep.subr.mxu0 0.0
    %434 = vmatpush1.msra.mxu0 0.0
    %435 = vmatprep.subr.mxu0 0.0
    %436 = vmatpush1.msra.mxu0 0.0
    %437 = vmatprep.subr.mxu0 0.0
    %438 = vmatpush1.msra.mxu0 0.0
    %439 = vmatprep.subr.mxu0 0.0
    %440 = vmatpush1.msra.mxu0 0.0
    %441 = vmatprep.subr.mxu0 0.0
    %442 = vmatpush1.msra.mxu0 0.0
    %443 = vmatprep.subr.mxu0 0.0
    %444 = vmatpush1.msra.mxu0 0.0
    %445 = vmatprep.subr.mxu0 0.0
    %446 = vmatpush1.msra.mxu0 0.0
    %447 = vmatprep.subr.mxu0 0.0
    %448 = vmatpush1.msra.mxu0 0.0
    %449 = vmatprep.subr.mxu0 0.0
    %450 = vmatpush1.msra.mxu0 0.0
    %451 = vmatprep.mubr.f32.mxu0 0.0
    %452 = vmatmul.mubr.f32.gmra.mrb[0].mxu0 %v385
    %v453 = vpop.f32.mrb[0].mxu0
    %v454 = vadd.f32 %v382, %v453
    %v455 = vpop.f32.mrb[0].mxu0
    %456 = vdwg.mxu0
    %v457 = vmax.f32 %v454, 0.0
    %v458 = vld [vmem:[#allocation9] sm:$0xff]
    %v459 = vld [vmem:[#allocation9 + $0x8] sm:$0xff]
    %v460 = vld [vmem:[#allocation9 + $0x10] sm:$0xff]
    %v461 = vld [vmem:[#allocation9 + $0x18] sm:$0xff]
    %v462 = vld [vmem:[#allocation10] sm:$0x1]
    %v464 = vlaneseq
    %v465 = vshrl.u32 %v464, 7
    %v466 = vsub.s32 0, %v465
    %v467 = vrot.slane %v462, %v466
    %v470 = vsel %vm212, %v457, 0
    %472 = vmatprep.subr.mxu0 0.0
    %473 = vmatpush1.msra.mxu0 %v458
    %474 = vmatprep.subr.mxu0 0.0
    %475 = vmatpush1.msra.mxu0 %v459
    %476 = vmatprep.subr.mxu0 0.0
    %477 = vmatpush1.msra.mxu0 %v460
    %478 = vmatprep.subr.mxu0 0.0
    %479 = vmatpush1.msra.mxu0 %v461
    %480 = vmatprep.subr.mxu0 0.0
    %481 = vmatpush1.msra.mxu0 0.0
    %482 = vmatprep.subr.mxu0 0.0
    %483 = vmatpush1.msra.mxu0 0.0
    %484 = vmatprep.subr.mxu0 0.0
    %485 = vmatpush1.msra.mxu0 0.0
    %486 = vmatprep.subr.mxu0 0.0
    %487 = vmatpush1.msra.mxu0 0.0
    %488 = vmatprep.subr.mxu0 0.0
    %489 = vmatpush1.msra.mxu0 0.0
    %490 = vmatprep.subr.mxu0 0.0
    %491 = vmatpush1.msra.mxu0 0.0
    %492 = vmatprep.subr.mxu0 0.0
    %493 = vmatpush1.msra.mxu0 0.0
    %494 = vmatprep.subr.mxu0 0.0
    %495 = vmatpush1.msra.mxu0 0.0
    %496 = vmatprep.subr.mxu0 0.0
    %497 = vmatpush1.msra.mxu0 0.0
    %498 = vmatprep.subr.mxu0 0.0
    %499 = vmatpush1.msra.mxu0 0.0
    %500 = vmatprep.subr.mxu0 0.0
    %501 = vmatpush1.msra.mxu0 0.0
    %502 = vmatprep.subr.mxu0 0.0
    %503 = vmatpush1.msra.mxu0 0.0
    %504 = vmatprep.subr.mxu0 0.0
    %505 = vmatpush1.msra.mxu0 0.0
    %506 = vmatprep.subr.mxu0 0.0
    %507 = vmatpush1.msra.mxu0 0.0
    %508 = vmatprep.subr.mxu0 0.0
    %509 = vmatpush1.msra.mxu0 0.0
    %510 = vmatprep.subr.mxu0 0.0
    %511 = vmatpush1.msra.mxu0 0.0
    %512 = vmatprep.subr.mxu0 0.0
    %513 = vmatpush1.msra.mxu0 0.0
    %514 = vmatprep.subr.mxu0 0.0
    %515 = vmatpush1.msra.mxu0 0.0
    %516 = vmatprep.subr.mxu0 0.0
    %517 = vmatpush1.msra.mxu0 0.0
    %518 = vmatprep.subr.mxu0 0.0
    %519 = vmatpush1.msra.mxu0 0.0
    %520 = vmatprep.subr.mxu0 0.0
    %521 = vmatpush1.msra.mxu0 0.0
    %522 = vmatprep.subr.mxu0 0.0
    %523 = vmatpush1.msra.mxu0 0.0
    %524 = vmatprep.subr.mxu0 0.0
    %525 = vmatpush1.msra.mxu0 0.0
    %526 = vmatprep.subr.mxu0 0.0
    %527 = vmatpush1.msra.mxu0 0.0
    %528 = vmatprep.subr.mxu0 0.0
    %529 = vmatpush1.msra.mxu0 0.0
    %530 = vmatprep.subr.mxu0 0.0
    %531 = vmatpush1.msra.mxu0 0.0
    %532 = vmatprep.subr.mxu0 0.0
    %533 = vmatpush1.msra.mxu0 0.0
    %534 = vmatprep.subr.mxu0 0.0
    %535 = vmatpush1.msra.mxu0 0.0
    %536 = vmatprep.mubr.f32.mxu0 0.0
    %537 = vmatmul.mubr.f32.gmra.mrb[0].mxu0 %v470
    %v538 = vpop.f32.mrb[0].mxu0
    %v539 = vadd.f32 %v467, %v538
    %v540 = vpop.f32.mrb[0].mxu0
    %541 = vdwg.mxu0
    %542 = vst [vmem:[%s11] sm:$0xff] %v539
    // Predicated region
    $region70: #{resnet1d_forward.1} parent=1 // pred_check
      _
    $region71: #{resnet1d_forward.1} parent=1 // pred_check_branch
      %544 = sbr.rel (0) target = $region73
    $region72: #{resnet1d_forward.1} parent=1 // pred_region
      _
    $region73: #{resnet1d_forward.1} parent=1 // pred_fallthru
      _
    // Predicated region
    $region74: #{resnet1d_forward.1} parent=1 // pred_check
      _
    $region75: #{resnet1d_forward.1} parent=1 // pred_check_branch
      %546 = sbr.rel (0) target = $region77
    $region76: #{resnet1d_forward.1} parent=1 // pred_region
      _
    $region77: #{resnet1d_forward.1} parent=1 // pred_fallthru
      _
    %547 = vsyncpa [#allocation3], 1
    %548 = vsyncpa [#allocation5], 1
    %549 = vsyncpa [#allocation8], 1
    %550 = vsyncpa [#allocation11], 1

</llo_original>
